<compile_context>
chip_gen: v6e
topology: v6e:2x2x1
jax: 0.10.0
libtpu: 0.0.40
codegen_flags: <defaults>
</compile_context>

<pallas_src>
import jax
import jax.numpy as jnp
from jax import lax
from jax.experimental import pallas as pl
from jax.experimental.pallas import tpu as pltpu


def _round_up(a, b):
    return (a + b - 1) // b * b


def _gcn_kernel(src_ref, d_ref, xc_ref, xr_ref, w_ref, b_ref, out_ref,
                h_ref, deg_ref):
    """One (row-tile i, column-tile j) grid step.

    src_ref : (1, E_pad)   int32  edge sources (grid-invariant, resident)
    d_ref   : (E_pad, TN)  bf16   dst one-hot column tile (precomputed)
    xc_ref  : (TN, Cin)    f32    x rows for this column tile (aggregation)
    xr_ref  : (TM, Cin)    f32    x rows for this row tile (self loops)
    w_ref   : (Cin, Cout)  f32    linear weight (resident)
    b_ref   : (1, Cout)    f32    linear bias (resident)
    out_ref : (TM, Cout)   f32    output row tile (written at last j only)
    h_ref   : (TM, Cin)    f32    VMEM accumulator for adj @ x
    deg_ref : (TM, 1)      f32    VMEM accumulator for row degree
    """
    j = pl.program_id(1)
    TM = out_ref.shape[0]
    E_pad = src_ref.shape[1]
    row0 = pl.program_id(0) * TM

    @pl.when(j == 0)
    def _():
        h_ref[...] = jnp.zeros_like(h_ref)
        deg_ref[...] = jnp.zeros_like(deg_ref)

    # One-hot strip ST[r, e] = (src[e] == row0 + r) -> [TM, E_pad].
    # {0, 1} is exact in bf16, so the adjacency matmul can run in bf16.
    row_ids = lax.broadcasted_iota(jnp.int32, (TM, E_pad), 0) + row0
    st = (jnp.broadcast_to(src_ref[...], (TM, E_pad)) == row_ids
          ).astype(jnp.bfloat16)

    # Adjacency tile via the MXU; clamp to 1 so duplicate edges collapse to a
    # single 1.0 (matches the reference's scatter-ASSIGN).  The clamp is
    # per-element and each column lives in exactly one column tile, so column
    # tiling does not change it.
    adj = jnp.dot(st, d_ref[...], preferred_element_type=jnp.float32)
    adj = jnp.minimum(adj, 1.0)

    deg_ref[...] += jnp.sum(adj, axis=1, keepdims=True)
    h_ref[...] += jnp.dot(adj, xc_ref[...], preferred_element_type=jnp.float32)

    @pl.when(j == pl.num_programs(1) - 1)
    def _():
        # Self loops: adj' = adj + I  =>  h += x[row tile], deg += 1.
        # deg >= 1 always, so the reference's `deg > 0` guard is dead code.
        deg = deg_ref[...] + 1.0
        h = (h_ref[...] + xr_ref[...]) * pl.reciprocal(deg, approx=False)
        out = jnp.dot(h, w_ref[...], preferred_element_type=jnp.float32)
        out_ref[...] = (out + b_ref[...]).astype(out_ref.dtype)


def simple_gcn_conv(x, edge_index, weight, bias):
    """x: [N, C_in] f32, edge_index: [2, E] int, weight: [C_in, C_out] f32,
    bias: [C_out] f32 -> [N, C_out] f32.

    Equivalent to PyTorch SimpleGCNConv.forward with weight stored as
    W = linear.weight.T (so the linear step is h @ W + b).
    """
    N, Cin = x.shape
    Cout = weight.shape[1]
    E = edge_index.shape[1]

    # --- Tile / padding choices ------------------------------------------
    Cin_pad = _round_up(Cin, 128)
    Cout_pad = _round_up(Cout, 128)
    E_pad = _round_up(max(E, 1), 128)             # MXU-aligned contraction dim

    N8 = _round_up(N, 8)
    if N8 >= 512:
        TM = 256                                  # fill 256x256 MXU rows (v6e/v7x)
    elif N8 >= 128:
        TM = 128
    elif N8 >= 16:
        TM = _round_up(N8 // 2, 8)                # >=2 parallel steps (v7x megacore)
    else:
        TM = N8
    N_pad = _round_up(N, TM)

    if N_pad > 512:                               # column-tile the node dim
        TN = 512
        N_pad = _round_up(N_pad, TN)              # TM in {128,256} divides 512
    else:
        TN = N_pad

    # --- Host-side prep (plain XLA, done once) ----------------------------
    x_p = jnp.pad(x.astype(jnp.float32), ((0, N_pad - N), (0, Cin_pad - Cin)))
    w_p = jnp.pad(weight.astype(jnp.float32),
                  ((0, Cin_pad - Cin), (0, Cout_pad - Cout)))
    b_p = jnp.pad(bias.astype(jnp.float32), (0, Cout_pad - Cout)
                  ).reshape(1, Cout_pad)

    src_p = jnp.pad(edge_index[0].astype(jnp.int32), (0, E_pad - E),
                    constant_values=-1).reshape(1, E_pad)
    dst_p = jnp.pad(edge_index[1].astype(jnp.int32), (0, E_pad - E),
                    constant_values=-1)
    # Grid-invariant dst one-hot, hoisted out of the kernel.
    d_p = (dst_p[:, None] == jnp.arange(N_pad, dtype=jnp.int32)[None, :]
           ).astype(jnp.bfloat16)                 # [E_pad, N_pad]

    n_i = N_pad // TM
    n_j = N_pad // TN

    # --- VMEM budget (streamed blocks double-buffered, residents counted) --
    est_vmem = (2 * E_pad * TN * 2               # D tiles (bf16, 2 buffers)
                + 2 * TN * Cin_pad * 4           # x column tiles
                + 2 * TM * Cin_pad * 4           # x row tiles
                + 2 * TM * Cout_pad * 4          # output tiles
                + 2 * Cin_pad * Cout_pad * 4     # weight (worst case 2 buffers)
                + 8 * E_pad * 4                  # src (sublane padded)
                + 8 * Cout_pad * 4               # bias (sublane padded)
                + TM * Cin_pad * 4               # h scratch
                + TM * 128 * 4)                  # deg scratch (lane padded)
    vmem_limit = int(min(64 * 2**20, max(32 * 2**20, 2 * est_vmem)))

    cost = pl.CostEstimate(
        flops=(2 * N_pad * E_pad * N_pad             # one-hot adjacency matmul
               + 2 * N_pad * N_pad * Cin_pad         # aggregation adj @ x
               + 2 * N_pad * Cin_pad * Cout_pad),    # linear
        transcendentals=0,
        bytes_accessed=(n_i * (2 * E_pad * N_pad + 4 * N_pad * Cin_pad)
                        + 4 * (N_pad * Cin_pad + Cin_pad * Cout_pad
                               + N_pad * Cout_pad + E_pad)),
    )

    def build_call(single_buffer_residents):
        def const_spec(shape):
            # src / W / b never change across the grid: single-buffer them so
            # they do not eat 2x VMEM (matters most on v7x's 64 MiB).
            if single_buffer_residents:
                return pl.BlockSpec(shape, lambda i, j: (0, 0),
                                    pipeline_mode=pl.Buffered(1))
            return pl.BlockSpec(shape, lambda i, j: (0, 0))

        grid_spec = pltpu.PrefetchScalarGridSpec(
            num_scalar_prefetch=0,
            grid=(n_i, n_j),
            in_specs=[
                const_spec((1, E_pad)),                              # src
                pl.BlockSpec((E_pad, TN), lambda i, j: (0, j)),      # D col tile
                pl.BlockSpec((TN, Cin_pad), lambda i, j: (j, 0)),    # x (agg)
                pl.BlockSpec((TM, Cin_pad), lambda i, j: (i, 0)),    # x (self)
                const_spec((Cin_pad, Cout_pad)),                     # W
                const_spec((1, Cout_pad)),                           # b
            ],
            out_specs=pl.BlockSpec((TM, Cout_pad), lambda i, j: (i, 0)),
            scratch_shapes=[pltpu.VMEM((TM, Cin_pad), jnp.float32),
                            pltpu.VMEM((TM, 1), jnp.float32)],
        )
        return pl.pallas_call(
            _gcn_kernel,
            out_shape=jax.ShapeDtypeStruct((N_pad, Cout_pad), jnp.float32),
            grid_spec=grid_spec,
            compiler_params=pltpu.CompilerParams(
                dimension_semantics=("parallel", "arbitrary"),
                vmem_limit_bytes=vmem_limit),
            cost_estimate=cost,
        )

    args = (src_p, d_p, x_p, x_p, w_p, b_p)
    try:
        out_pad = build_call(True)(*args)
    except Exception:
        # Fallback for Pallas versions that reject pl.Buffered(1) on inputs:
        # default double-buffering (correctness identical, slightly more VMEM).
        out_pad = build_call(False)(*args)

    return out_pad[:N, :Cout]


def _reference(x, edge_index, weight, bias):
    N = x.shape[0]
    adj = jnp.zeros((N, N), jnp.float32)
    if edge_index.shape[1] > 0:
        adj = adj.at[edge_index[0], edge_index[1]].set(1.0)
    adj = adj + jnp.eye(N, dtype=jnp.float32)
    deg = adj.sum(axis=1, keepdims=True)
    deg = jnp.where(deg > 0, deg, jnp.ones_like(deg))
    adj = adj / deg
    return (adj @ x) @ weight + bias


if __name__ == "__main__":
    key = jax.random.PRNGKey(0)
    k_x, k_e1, k_e2, k_w, k_b = jax.random.split(key, 5)

    N = 8            # num_nodes
    C_IN = 16        # in_channels
    C_OUT = 32       # out_channels
    E = 12           # num edges

    x = jax.random.normal(k_x, (N, C_IN), dtype=jnp.float32)
    edge_index = jnp.stack([
        jax.random.randint(k_e1, (E,), 0, N, dtype=jnp.int32),
        jax.random.randint(k_e2, (E,), 0, N, dtype=jnp.int32),
    ], axis=0)

    # nn.Linear-shaped parameters (W stored as [C_in, C_out], b: [C_out]).
    bound = 1.0 / jnp.sqrt(jnp.float32(C_IN))
    weight = jax.random.uniform(k_w, (C_IN, C_OUT), jnp.float32, -bound, bound)
    bias = jax.random.uniform(k_b, (C_OUT,), jnp.float32, -bound, bound)

    out = simple_gcn_conv(x, edge_index, weight, bias)
    out = jax.block_until_ready(out)

    ref = _reference(x, edge_index, weight, bias)
    assert out.shape == (N, C_OUT)
    assert jnp.allclose(out, ref, atol=1e-5, rtol=1e-5), "mismatch vs reference"

    print("KERNEL_OK")
</pallas_src>

<mosaic_0001>
module attributes {stable_mosaic.version = 11 : i64} {
  func.func @_gcn_kernel(%arg0: i32, %arg1: i32, %arg2: memref<1x128xi32, #tpu.memory_space<vmem>>, %arg3: memref<128x8xbf16, #tpu.memory_space<vmem>>, %arg4: memref<8x128xf32, #tpu.memory_space<vmem>>, %arg5: memref<8x128xf32, #tpu.memory_space<vmem>>, %arg6: memref<128x128xf32, #tpu.memory_space<vmem>>, %arg7: memref<1x128xf32, #tpu.memory_space<vmem>>, %arg8: memref<8x128xf32, #tpu.memory_space<vmem>>, %arg9: memref<8x128xf32, #tpu.memory_space<vmem>>, %arg10: memref<8x1xf32, #tpu.memory_space<vmem>>) attributes {dimension_semantics = [#tpu.dimension_semantics<parallel>, #tpu.dimension_semantics<arbitrary>], iteration_bounds = array<i64: 1, 1>, scalar_prefetch = 0 : i64, scratch_operands = 2 : i64, tpu.core_type = #tpu.core_type<tc>, window_params = [{pipeline_mode = #tpu.pipeline_mode<synchronous>, transform_indices = @transform_0, window_bounds = array<i64: 1, 128>}, {transform_indices = @transform_1, window_bounds = array<i64: 128, 8>}, {transform_indices = @transform_2, window_bounds = array<i64: 8, 128>}, {transform_indices = @transform_3, window_bounds = array<i64: 8, 128>}, {pipeline_mode = #tpu.pipeline_mode<synchronous>, transform_indices = @transform_4, window_bounds = array<i64: 128, 128>}, {pipeline_mode = #tpu.pipeline_mode<synchronous>, transform_indices = @transform_5, window_bounds = array<i64: 1, 128>}, {transform_indices = @transform_6, window_bounds = array<i64: 8, 128>}]} {
    %c8_i32 = arith.constant 8 : i32
    %0 = arith.muli %arg0, %c8_i32 : i32
    %c0_i32 = arith.constant 0 : i32
    %1 = arith.cmpi eq, %arg1, %c0_i32 : i32
    %2 = arith.extui %1 : i1 to i32
    %c0_i32_0 = arith.constant 0 : i32
    %3 = arith.cmpi ne, %2, %c0_i32_0 : i32
    scf.if %3 {
      %cst_19 = arith.constant 0.000000e+00 : f32
      %31 = vector.broadcast %cst_19 : f32 to vector<8x128xf32>
      %c0_20 = arith.constant 0 : index
      %c0_21 = arith.constant 0 : index
      %32 = vector.load %arg9[%c0_20, %c0_21] : memref<8x128xf32, #tpu.memory_space<vmem>>, vector<8x128xf32>
      tpu.vector_store %arg9[%c0_20, %c0_21], %31 {strides = array<i32>} : memref<8x128xf32, #tpu.memory_space<vmem>>, vector<8x128xf32>,
      %cst_22 = arith.constant 0.000000e+00 : f32
      %33 = vector.broadcast %cst_22 : f32 to vector<8x1xf32>
      %c0_23 = arith.constant 0 : index
      %c0_24 = arith.constant 0 : index
      %34 = vector.load %arg10[%c0_23, %c0_24] : memref<8x1xf32, #tpu.memory_space<vmem>>, vector<8x1xf32>
      tpu.vector_store %arg10[%c0_23, %c0_24], %33 {strides = array<i32>} : memref<8x1xf32, #tpu.memory_space<vmem>>, vector<8x1xf32>,
    } else {
    }
    %4 = tpu.iota {dimensions = array<i32: 0>} : vector<8x128xi32>
    %5 = vector.broadcast %0 : i32 to vector<8x128xi32>
    %6 = arith.addi %4, %5 : vector<8x128xi32>
    %c0 = arith.constant 0 : index
    %c0_1 = arith.constant 0 : index
    %7 = vector.load %arg2[%c0, %c0_1] : memref<1x128xi32, #tpu.memory_space<vmem>>, vector<1x128xi32>
    %8 = vector.shape_cast %7 : vector<1x128xi32> to vector<1x128xi32>
    %9 = vector.broadcast %8 : vector<1x128xi32> to vector<8x128xi32>
    %10 = arith.cmpi eq, %9, %6 : vector<8x128xi32>
    %11 = arith.extui %10 : vector<8x128xi1> to vector<8x128xi32>
    %12 = arith.sitofp %11 : vector<8x128xi32> to vector<8x128xf32>
    %13 = arith.truncf %12 : vector<8x128xf32> to vector<8x128xbf16>
    %c0_2 = arith.constant 0 : index
    %c0_3 = arith.constant 0 : index
    %14 = vector.load %arg3[%c0_2, %c0_3] : memref<128x8xbf16, #tpu.memory_space<vmem>>, vector<128x8xbf16>
    %cst = arith.constant dense<0.000000e+00> : vector<8x8xf32>
    %15 = tpu.matmul %13, %14, %cst {dimension_numbers = #tpu.dot_dimension_numbers<[1], [0], [0], [1], [0, 0, 1, 1], [], []>} : vector<8x128xbf16>, vector<128x8xbf16>, vector<8x8xf32> -> vector<8x8xf32>
    %cst_4 = arith.constant 1.000000e+00 : f32
    %16 = vector.broadcast %cst_4 : f32 to vector<8x8xf32>
    %17 = arith.minimumf %15, %16 : vector<8x8xf32>
    %c0_5 = arith.constant 0 : index
    %c0_6 = arith.constant 0 : index
    %18 = vector.load %arg10[%c0_5, %c0_6] : memref<8x1xf32, #tpu.memory_space<vmem>>, vector<8x1xf32>
    %cst_7 = arith.constant dense<0.000000e+00> : vector<8xf32>
    %19 = vector.multi_reduction <add>, %17, %cst_7 [1] : vector<8x8xf32> to vector<8xf32>
    %20 = vector.shape_cast %19 : vector<8xf32> to vector<8x1xf32>
    %21 = arith.addf %18, %20 : vector<8x1xf32>
    %c0_8 = arith.constant 0 : index
    %c0_9 = arith.constant 0 : index
    %22 = vector.load %arg10[%c0_8, %c0_9] : memref<8x1xf32, #tpu.memory_space<vmem>>, vector<8x1xf32>
    tpu.vector_store %arg10[%c0_8, %c0_9], %21 {strides = array<i32>} : memref<8x1xf32, #tpu.memory_space<vmem>>, vector<8x1xf32>,
    %c0_10 = arith.constant 0 : index
    %c0_11 = arith.constant 0 : index
    %23 = vector.load %arg9[%c0_10, %c0_11] : memref<8x128xf32, #tpu.memory_space<vmem>>, vector<8x128xf32>
    %c0_12 = arith.constant 0 : index
    %c0_13 = arith.constant 0 : index
    %24 = vector.load %arg4[%c0_12, %c0_13] : memref<8x128xf32, #tpu.memory_space<vmem>>, vector<8x128xf32>
    %cst_14 = arith.constant dense<0.000000e+00> : vector<8x128xf32>
    %25 = tpu.matmul %17, %24, %cst_14 {dimension_numbers = #tpu.dot_dimension_numbers<[1], [0], [0], [1], [0, 0, 1, 1], [], []>} : vector<8x8xf32>, vector<8x128xf32>, vector<8x128xf32> -> vector<8x128xf32>
    %26 = arith.addf %23, %25 : vector<8x128xf32>
    %c0_15 = arith.constant 0 : index
    %c0_16 = arith.constant 0 : index
    %27 = vector.load %arg9[%c0_15, %c0_16] : memref<8x128xf32, #tpu.memory_space<vmem>>, vector<8x128xf32>
    tpu.vector_store %arg9[%c0_15, %c0_16], %26 {strides = array<i32>} : memref<8x128xf32, #tpu.memory_space<vmem>>, vector<8x128xf32>,
    %c0_i32_17 = arith.constant 0 : i32
    %28 = arith.cmpi eq, %arg1, %c0_i32_17 : i32
    %29 = arith.extui %28 : i1 to i32
    %c0_i32_18 = arith.constant 0 : i32
    %30 = arith.cmpi ne, %29, %c0_i32_18 : i32
    scf.if %30 {
      %c0_19 = arith.constant 0 : index
      %c0_20 = arith.constant 0 : index
      %31 = vector.load %arg10[%c0_19, %c0_20] : memref<8x1xf32, #tpu.memory_space<vmem>>, vector<8x1xf32>
      %cst_21 = arith.constant 1.000000e+00 : f32
      %32 = vector.broadcast %cst_21 : f32 to vector<8x1xf32>
      %33 = arith.addf %31, %32 : vector<8x1xf32>
      %c0_22 = arith.constant 0 : index
      %c0_23 = arith.constant 0 : index
      %34 = vector.load %arg9[%c0_22, %c0_23] : memref<8x128xf32, #tpu.memory_space<vmem>>, vector<8x128xf32>
      %c0_24 = arith.constant 0 : index
      %c0_25 = arith.constant 0 : index
      %35 = vector.load %arg5[%c0_24, %c0_25] : memref<8x128xf32, #tpu.memory_space<vmem>>, vector<8x128xf32>
      %36 = arith.addf %34, %35 : vector<8x128xf32>
      %37 = tpu.reciprocal %33 : vector<8x1xf32> -> vector<8x1xf32>
      %38 = vector.broadcast %37 : vector<8x1xf32> to vector<8x128xf32>
      %39 = arith.mulf %36, %38 : vector<8x128xf32>
      %c0_26 = arith.constant 0 : index
      %c0_27 = arith.constant 0 : index
      %40 = vector.load %arg6[%c0_26, %c0_27] : memref<128x128xf32, #tpu.memory_space<vmem>>, vector<128x128xf32>
      %cst_28 = arith.constant dense<0.000000e+00> : vector<8x128xf32>
      %41 = tpu.matmul %39, %40, %cst_28 {dimension_numbers = #tpu.dot_dimension_numbers<[1], [0], [0], [1], [0, 0, 1, 1], [], []>} : vector<8x128xf32>, vector<128x128xf32>, vector<8x128xf32> -> vector<8x128xf32>
      %c0_29 = arith.constant 0 : index
      %c0_30 = arith.constant 0 : index
      %42 = vector.load %arg7[%c0_29, %c0_30] : memref<1x128xf32, #tpu.memory_space<vmem>>, vector<1x128xf32>
      %43 = vector.broadcast %42 : vector<1x128xf32> to vector<8x128xf32>
      %44 = arith.addf %41, %43 : vector<8x128xf32>
      %c0_31 = arith.constant 0 : index
      %c0_32 = arith.constant 0 : index
      %45 = vector.load %arg8[%c0_31, %c0_32] : memref<8x128xf32, #tpu.memory_space<vmem>>, vector<8x128xf32>
      tpu.vector_store %arg8[%c0_31, %c0_32], %44 {strides = array<i32>} : memref<8x128xf32, #tpu.memory_space<vmem>>, vector<8x128xf32>,
    } else {
    }
    return
  }
  func.func @transform_0(%arg0: i32, %arg1: i32) -> (i32, i32) {
    %c0_i32 = arith.constant 0 : i32
    %c0_i32_0 = arith.constant 0 : i32
    %c0_i32_1 = arith.constant 0 : i32
    return %c0_i32, %c0_i32_0 : i32, i32
  }
  func.func @transform_1(%arg0: i32, %arg1: i32) -> (i32, i32) {
    %c0_i32 = arith.constant 0 : i32
    %c0_i32_0 = arith.constant 0 : i32
    return %c0_i32, %arg1 : i32, i32
  }
  func.func @transform_2(%arg0: i32, %arg1: i32) -> (i32, i32) {
    %c0_i32 = arith.constant 0 : i32
    %c0_i32_0 = arith.constant 0 : i32
    return %arg1, %c0_i32 : i32, i32
  }
  func.func @transform_3(%arg0: i32, %arg1: i32) -> (i32, i32) {
    %c0_i32 = arith.constant 0 : i32
    %c0_i32_0 = arith.constant 0 : i32
    return %arg0, %c0_i32 : i32, i32
  }
  func.func @transform_4(%arg0: i32, %arg1: i32) -> (i32, i32) {
    %c0_i32 = arith.constant 0 : i32
    %c0_i32_0 = arith.constant 0 : i32
    %c0_i32_1 = arith.constant 0 : i32
    return %c0_i32, %c0_i32_0 : i32, i32
  }
  func.func @transform_5(%arg0: i32, %arg1: i32) -> (i32, i32) {
    %c0_i32 = arith.constant 0 : i32
    %c0_i32_0 = arith.constant 0 : i32
    %c0_i32_1 = arith.constant 0 : i32
    return %c0_i32, %c0_i32_0 : i32, i32
  }
  func.func @transform_6(%arg0: i32, %arg1: i32) -> (i32, i32) {
    %c0_i32 = arith.constant 0 : i32
    %c0_i32_0 = arith.constant 0 : i32
    return %arg0, %c0_i32 : i32, i32
  }
}

module attributes {stable_mosaic.version = 11 : i64} {
  func.func @_gcn_kernel(%arg0: i32, %arg1: i32, %arg2: memref<1x128xi32, #tpu.memory_space<vmem>>, %arg3: memref<128x8xbf16, #tpu.memory_space<vmem>>, %arg4: memref<8x128xf32, #tpu.memory_space<vmem>>, %arg5: memref<8x128xf32, #tpu.memory_space<vmem>>, %arg6: memref<128x128xf32, #tpu.memory_space<vmem>>, %arg7: memref<1x128xf32, #tpu.memory_space<vmem>>, %arg8: memref<8x128xf32, #tpu.memory_space<vmem>>, %arg9: memref<8x128xf32, #tpu.memory_space<vmem>>, %arg10: memref<8x1xf32, #tpu.memory_space<vmem>>) attributes {dimension_semantics = [#tpu.dimension_semantics<parallel>, #tpu.dimension_semantics<arbitrary>], iteration_bounds = array<i64: 1, 1>, scalar_prefetch = 0 : i64, scratch_operands = 2 : i64, tpu.core_type = #tpu.core_type<tc>, window_params = [{pipeline_mode = #tpu.pipeline_mode<synchronous>, transform_indices = @transform_0, window_bounds = array<i64: 1, 128>}, {transform_indices = @transform_1, window_bounds = array<i64: 128, 8>}, {transform_indices = @transform_2, window_bounds = array<i64: 8, 128>}, {transform_indices = @transform_3, window_bounds = array<i64: 8, 128>}, {pipeline_mode = #tpu.pipeline_mode<synchronous>, transform_indices = @transform_4, window_bounds = array<i64: 128, 128>}, {pipeline_mode = #tpu.pipeline_mode<synchronous>, transform_indices = @transform_5, window_bounds = array<i64: 1, 128>}, {transform_indices = @transform_6, window_bounds = array<i64: 8, 128>}]} {
    %c8_i32 = arith.constant 8 : i32
    %0 = arith.muli %arg0, %c8_i32 : i32
    %c0_i32 = arith.constant 0 : i32
    %1 = arith.cmpi eq, %arg1, %c0_i32 : i32
    %2 = arith.extui %1 : i1 to i32
    %c0_i32_0 = arith.constant 0 : i32
    %3 = arith.cmpi ne, %2, %c0_i32_0 : i32
    scf.if %3 {
      %cst_19 = arith.constant 0.000000e+00 : f32
      %31 = vector.broadcast %cst_19 : f32 to vector<8x128xf32>
      %c0_20 = arith.constant 0 : index
      %c0_21 = arith.constant 0 : index
      %32 = vector.load %arg9[%c0_20, %c0_21] : memref<8x128xf32, #tpu.memory_space<vmem>>, vector<8x128xf32>
      tpu.vector_store %arg9[%c0_20, %c0_21], %31 {strides = array<i32>} : memref<8x128xf32, #tpu.memory_space<vmem>>, vector<8x128xf32>,
      %cst_22 = arith.constant 0.000000e+00 : f32
      %33 = vector.broadcast %cst_22 : f32 to vector<8x1xf32>
      %c0_23 = arith.constant 0 : index
      %c0_24 = arith.constant 0 : index
      %34 = vector.load %arg10[%c0_23, %c0_24] : memref<8x1xf32, #tpu.memory_space<vmem>>, vector<8x1xf32>
      tpu.vector_store %arg10[%c0_23, %c0_24], %33 {strides = array<i32>} : memref<8x1xf32, #tpu.memory_space<vmem>>, vector<8x1xf32>,
    } else {
    }
    %4 = tpu.iota {dimensions = array<i32: 0>} : vector<8x128xi32>
    %5 = vector.broadcast %0 : i32 to vector<8x128xi32>
    %6 = arith.addi %4, %5 : vector<8x128xi32>
    %c0 = arith.constant 0 : index
    %c0_1 = arith.constant 0 : index
    %7 = vector.load %arg2[%c0, %c0_1] : memref<1x128xi32, #tpu.memory_space<vmem>>, vector<1x128xi32>
    %8 = vector.shape_cast %7 : vector<1x128xi32> to vector<1x128xi32>
    %9 = vector.broadcast %8 : vector<1x128xi32> to vector<8x128xi32>
    %10 = arith.cmpi eq, %9, %6 : vector<8x128xi32>
    %11 = arith.extui %10 : vector<8x128xi1> to vector<8x128xi32>
    %12 = arith.sitofp %11 : vector<8x128xi32> to vector<8x128xf32>
    %13 = arith.truncf %12 : vector<8x128xf32> to vector<8x128xbf16>
    %c0_2 = arith.constant 0 : index
    %c0_3 = arith.constant 0 : index
    %14 = vector.load %arg3[%c0_2, %c0_3] : memref<128x8xbf16, #tpu.memory_space<vmem>>, vector<128x8xbf16>
    %cst = arith.constant dense<0.000000e+00> : vector<8x8xf32>
    %15 = tpu.matmul %13, %14, %cst {dimension_numbers = #tpu.dot_dimension_numbers<[1], [0], [0], [1], [0, 0, 1, 1], [], []>} : vector<8x128xbf16>, vector<128x8xbf16>, vector<8x8xf32> -> vector<8x8xf32>
    %cst_4 = arith.constant 1.000000e+00 : f32
    %16 = vector.broadcast %cst_4 : f32 to vector<8x8xf32>
    %17 = arith.minimumf %15, %16 : vector<8x8xf32>
    %c0_5 = arith.constant 0 : index
    %c0_6 = arith.constant 0 : index
    %18 = vector.load %arg10[%c0_5, %c0_6] : memref<8x1xf32, #tpu.memory_space<vmem>>, vector<8x1xf32>
    %cst_7 = arith.constant dense<0.000000e+00> : vector<8xf32>
    %19 = vector.multi_reduction <add>, %17, %cst_7 [1] : vector<8x8xf32> to vector<8xf32>
    %20 = vector.shape_cast %19 : vector<8xf32> to vector<8x1xf32>
    %21 = arith.addf %18, %20 : vector<8x1xf32>
    %c0_8 = arith.constant 0 : index
    %c0_9 = arith.constant 0 : index
    %22 = vector.load %arg10[%c0_8, %c0_9] : memref<8x1xf32, #tpu.memory_space<vmem>>, vector<8x1xf32>
    tpu.vector_store %arg10[%c0_8, %c0_9], %21 {strides = array<i32>} : memref<8x1xf32, #tpu.memory_space<vmem>>, vector<8x1xf32>,
    %c0_10 = arith.constant 0 : index
    %c0_11 = arith.constant 0 : index
    %23 = vector.load %arg9[%c0_10, %c0_11] : memref<8x128xf32, #tpu.memory_space<vmem>>, vector<8x128xf32>
    %c0_12 = arith.constant 0 : index
    %c0_13 = arith.constant 0 : index
    %24 = vector.load %arg4[%c0_12, %c0_13] : memref<8x128xf32, #tpu.memory_space<vmem>>, vector<8x128xf32>
    %cst_14 = arith.constant dense<0.000000e+00> : vector<8x128xf32>
    %25 = tpu.matmul %17, %24, %cst_14 {dimension_numbers = #tpu.dot_dimension_numbers<[1], [0], [0], [1], [0, 0, 1, 1], [], []>} : vector<8x8xf32>, vector<8x128xf32>, vector<8x128xf32> -> vector<8x128xf32>
    %26 = arith.addf %23, %25 : vector<8x128xf32>
    %c0_15 = arith.constant 0 : index
    %c0_16 = arith.constant 0 : index
    %27 = vector.load %arg9[%c0_15, %c0_16] : memref<8x128xf32, #tpu.memory_space<vmem>>, vector<8x128xf32>
    tpu.vector_store %arg9[%c0_15, %c0_16], %26 {strides = array<i32>} : memref<8x128xf32, #tpu.memory_space<vmem>>, vector<8x128xf32>,
    %c0_i32_17 = arith.constant 0 : i32
    %28 = arith.cmpi eq, %arg1, %c0_i32_17 : i32
    %29 = arith.extui %28 : i1 to i32
    %c0_i32_18 = arith.constant 0 : i32
    %30 = arith.cmpi ne, %29, %c0_i32_18 : i32
    scf.if %30 {
      %c0_19 = arith.constant 0 : index
      %c0_20 = arith.constant 0 : index
      %31 = vector.load %arg10[%c0_19, %c0_20] : memref<8x1xf32, #tpu.memory_space<vmem>>, vector<8x1xf32>
      %cst_21 = arith.constant 1.000000e+00 : f32
      %32 = vector.broadcast %cst_21 : f32 to vector<8x1xf32>
      %33 = arith.addf %31, %32 : vector<8x1xf32>
      %c0_22 = arith.constant 0 : index
      %c0_23 = arith.constant 0 : index
      %34 = vector.load %arg9[%c0_22, %c0_23] : memref<8x128xf32, #tpu.memory_space<vmem>>, vector<8x128xf32>
      %c0_24 = arith.constant 0 : index
      %c0_25 = arith.constant 0 : index
      %35 = vector.load %arg5[%c0_24, %c0_25] : memref<8x128xf32, #tpu.memory_space<vmem>>, vector<8x128xf32>
      %36 = arith.addf %34, %35 : vector<8x128xf32>
      %37 = tpu.reciprocal %33 : vector<8x1xf32> -> vector<8x1xf32>
      %38 = vector.broadcast %37 : vector<8x1xf32> to vector<8x128xf32>
      %39 = arith.mulf %36, %38 : vector<8x128xf32>
      %c0_26 = arith.constant 0 : index
      %c0_27 = arith.constant 0 : index
      %40 = vector.load %arg6[%c0_26, %c0_27] : memref<128x128xf32, #tpu.memory_space<vmem>>, vector<128x128xf32>
      %cst_28 = arith.constant dense<0.000000e+00> : vector<8x128xf32>
      %41 = tpu.matmul %39, %40, %cst_28 {dimension_numbers = #tpu.dot_dimension_numbers<[1], [0], [0], [1], [0, 0, 1, 1], [], []>} : vector<8x128xf32>, vector<128x128xf32>, vector<8x128xf32> -> vector<8x128xf32>
      %c0_29 = arith.constant 0 : index
      %c0_30 = arith.constant 0 : index
      %42 = vector.load %arg7[%c0_29, %c0_30] : memref<1x128xf32, #tpu.memory_space<vmem>>, vector<1x128xf32>
      %43 = vector.broadcast %42 : vector<1x128xf32> to vector<8x128xf32>
      %44 = arith.addf %41, %43 : vector<8x128xf32>
      %c0_31 = arith.constant 0 : index
      %c0_32 = arith.constant 0 : index
      %45 = vector.load %arg8[%c0_31, %c0_32] : memref<8x128xf32, #tpu.memory_space<vmem>>, vector<8x128xf32>
      tpu.vector_store %arg8[%c0_31, %c0_32], %44 {strides = array<i32>} : memref<8x128xf32, #tpu.memory_space<vmem>>, vector<8x128xf32>,
    } else {
    }
    return
  }
  func.func @transform_0(%arg0: i32, %arg1: i32) -> (i32, i32) {
    %c0_i32 = arith.constant 0 : i32
    %c0_i32_0 = arith.constant 0 : i32
    %c0_i32_1 = arith.constant 0 : i32
    return %c0_i32, %c0_i32_0 : i32, i32
  }
  func.func @transform_1(%arg0: i32, %arg1: i32) -> (i32, i32) {
    %c0_i32 = arith.constant 0 : i32
    %c0_i32_0 = arith.constant 0 : i32
    return %c0_i32, %arg1 : i32, i32
  }
  func.func @transform_2(%arg0: i32, %arg1: i32) -> (i32, i32) {
    %c0_i32 = arith.constant 0 : i32
    %c0_i32_0 = arith.constant 0 : i32
    return %arg1, %c0_i32 : i32, i32
  }
  func.func @transform_3(%arg0: i32, %arg1: i32) -> (i32, i32) {
    %c0_i32 = arith.constant 0 : i32
    %c0_i32_0 = arith.constant 0 : i32
    return %arg0, %c0_i32 : i32, i32
  }
  func.func @transform_4(%arg0: i32, %arg1: i32) -> (i32, i32) {
    %c0_i32 = arith.constant 0 : i32
    %c0_i32_0 = arith.constant 0 : i32
    %c0_i32_1 = arith.constant 0 : i32
    return %c0_i32, %c0_i32_0 : i32, i32
  }
  func.func @transform_5(%arg0: i32, %arg1: i32) -> (i32, i32) {
    %c0_i32 = arith.constant 0 : i32
    %c0_i32_0 = arith.constant 0 : i32
    %c0_i32_1 = arith.constant 0 : i32
    return %c0_i32, %c0_i32_0 : i32, i32
  }
  func.func @transform_6(%arg0: i32, %arg1: i32) -> (i32, i32) {
    %c0_i32 = arith.constant 0 : i32
    %c0_i32_0 = arith.constant 0 : i32
    return %arg0, %c0_i32 : i32, i32
  }
}

</mosaic_0001>

<llo_original>
// kernel: tpu_custom_call.1
$region0: #{tpu_custom_call.1}
  #allocation0 [shape = 'u32[]', space=smem, size = 0x4, offset = 0x4, fixed_abs, tag = 'smem constant byte address 0x4 - core index']
  #allocation1 [shape = 'u32[144,128]{1,0:T(1,128)}', space=vmem, size = 0x12000, scoped, tag = 'internal scratch']
  #allocation2 [shape = 'f32[8,128]{1,0:T(8,128)}', space=vmem, size = 0x1000, scoped, tag = 'scratch operand']
  #allocation3 [shape = 'f32[8,1]{1,0:T(8,128)}', space=vmem, size = 0x1000, scoped, tag = 'scratch operand']
  %s0 = inlined_call_operand.vmem [shape: s32[1,128], index: 0, kind: input, shape index: {}]
  %s1 = inlined_call_operand.vmem [shape: bf16[128,8], index: 1, kind: input, shape index: {}]
  %s2 = inlined_call_operand.vmem [shape: f32[8,128], index: 2, kind: input, shape index: {}]
  %s3 = inlined_call_operand.vmem [shape: f32[8,128], index: 3, kind: input, shape index: {}]
  %s4 = inlined_call_operand.hbm [shape: f32[128,128], index: 4, kind: input, shape index: {}]
  %s5 = inlined_call_operand.vmem [shape: f32[1,128], index: 5, kind: input, shape index: {}]
  %s6 = inlined_call_operand.hbm [shape: f32[8,128], index: 6, kind: output, shape index: {}]
  %s7 = sld [smem:[#allocation0]]
  $region46: #{tpu_custom_call.1} parent=0
    _
  %s9 = ssub.s32 1, %s7
  %s10 = scalar_select 0, %s9, %s7
  $region1: #{tpu_custom_call.1} parent=0
    #allocation4 [shape = 'u8[65536]{0}', space=vmem, size = 0x10000, scoped, tag = 'input window, operand 4, single buffered']
    #allocation5 [shape = 's32[1]{0}', space=sflag, size = 0x4, scoped, tag = 'scoped memory for tpu_custom_call.1']
    #allocation6 [shape = 's32[1]{0}', space=sflag, size = 0x4, scoped, tag = 'scoped memory for tpu_custom_call.1']
    #allocation7 [shape = 'u8[4096]{0}', space=vmem, size = 0x1000, scoped, tag = 'output window, operand 0, single buffered']
    %11 = vsyncpa [#allocation5], 0
    %12 = vsyncpa [#allocation6], 0
    // Predicated region
    $region2: #{tpu_custom_call.1} parent=1 // pred_check
      _
    $region3: #{tpu_custom_call.1} parent=1 // pred_check_branch
      %14 = sbr.rel (0) target = $region5
    $region4: #{tpu_custom_call.1} parent=1 // pred_region
      _
    $region5: #{tpu_custom_call.1} parent=1 // pred_fallthru
      _
    // Predicated region
    $region6: #{tpu_custom_call.1} parent=1 // pred_check
      _
    $region7: #{tpu_custom_call.1} parent=1 // pred_check_branch
      %16 = sbr.rel (0) target = $region9
    $region8: #{tpu_custom_call.1} parent=1 // pred_region
      _
    $region9: #{tpu_custom_call.1} parent=1 // pred_fallthru
      _
    // Predicated region
    $region10: #{tpu_custom_call.1} parent=1 // pred_check
      _
    $region11: #{tpu_custom_call.1} parent=1 // pred_check_branch
      %18 = sbr.rel (0) target = $region13
    $region12: #{tpu_custom_call.1} parent=1 // pred_region
      _
    $region13: #{tpu_custom_call.1} parent=1 // pred_fallthru
      _
    // Predicated region
    $region14: #{tpu_custom_call.1} parent=1 // pred_check
      _
    $region15: #{tpu_custom_call.1} parent=1 // pred_check_branch
      %20 = sbr.rel (0) target = $region17
    $region16: #{tpu_custom_call.1} parent=1 // pred_region
      _
    $region17: #{tpu_custom_call.1} parent=1 // pred_fallthru
      _
    // Predicated region
    $region18: #{tpu_custom_call.1} parent=1 // pred_check
      _
    $region19: #{tpu_custom_call.1} parent=1 // pred_check_branch
      %22 = sbr.rel (0) target = $region21
    $region20: #{tpu_custom_call.1} parent=1 // pred_region
      %s24 = ssub.s32 2048, 2048
      %25 = vsyncadd [#allocation5], %s24
      %s26 = sshll.u32 [#allocation4], 4
      %s27 = int_to_ptr.vmem [resolvable:$true] %s26
      %32 = dma.hbm_to_vmem [thread:$0]  %s4, 2048, %s27, [#allocation5], 128, 128, 8
    $region21: #{tpu_custom_call.1} parent=1 // pred_fallthru
      _
    // Predicated region
    $region22: #{tpu_custom_call.1} parent=1 // pred_check
      _
    $region23: #{tpu_custom_call.1} parent=1 // pred_check_branch
      %34 = sbr.rel (0) target = $region25
    $region24: #{tpu_custom_call.1} parent=1 // pred_region
      _
    $region25: #{tpu_custom_call.1} parent=1 // pred_fallthru
      _
    // Predicated region
    $region26: #{tpu_custom_call.1} parent=1 // pred_check
      _
    $region27: #{tpu_custom_call.1} parent=1 // pred_check_branch
      %36 = sbr.rel (0) target = $region29
    $region28: #{tpu_custom_call.1} parent=1 // pred_region
      %37 = dma.done [#allocation5], 2048
    $region29: #{tpu_custom_call.1} parent=1 // pred_fallthru
      _
    %s39 = smul.u32 0, 8
    %p40 = scmp.eq.s32.totalorder 0, 0
    // Predicated region
    $region30: #{tpu_custom_call.1} parent=1 // pred_check
      %p41 = pneg %p40
    $region31: #{tpu_custom_call.1} parent=1 // pred_check_branch
      %43 = sbr.rel (%p41) target = $region33
    $region32: #{tpu_custom_call.1} parent=1 // pred_region
      %44 = vst [vmem:[#allocation2] sm:$0xff] 0.0
      %vm45 = vcmask 7168
      %46 = vst.msk [vmem:[#allocation3] sm:$0xff] %vm45, 0.0
    $region33: #{tpu_custom_call.1} parent=1 // pred_fallthru
      _
    %v47 = vlaneseq
    %v48 = vshrl.u32 %v47, 7
    %v49 = vstv %s39
    %v50 = vadd.s32 %v48, %v49
    %v51 = vld [vmem:[%s0] sm:$0x1]
    %v52 = vlaneseq
    %v53 = vshrl.u32 %v52, 7
    %v54 = vsub.s32 0, %v53
    %v55 = vrot.slane %v51, %v54
    %vm56 = vcmp.eq.s32.totalorder %v55, %v50
    %v57 = vsel %vm56, 1, 0
    %v58 = vcvt.s32.f32 %v57
    %v59 = vpack.c.bf16 %v58, %v58
    %v60 = vld [vmem:[%s1] sm:$0xf]
    %v61 = vld [vmem:[%s1 + $0x4] sm:$0xf]
    %v62 = vld [vmem:[%s1 + $0x8] sm:$0xf]
    %v63 = vld [vmem:[%s1 + $0xc] sm:$0xf]
    %v64 = vld [vmem:[%s1 + $0x10] sm:$0xf]
    %v65 = vld [vmem:[%s1 + $0x14] sm:$0xf]
    %v66 = vld [vmem:[%s1 + $0x18] sm:$0xf]
    %v67 = vld [vmem:[%s1 + $0x1c] sm:$0xf]
    %v68 = vld [vmem:[%s1 + $0x20] sm:$0xf]
    %v69 = vld [vmem:[%s1 + $0x24] sm:$0xf]
    %v70 = vld [vmem:[%s1 + $0x28] sm:$0xf]
    %v71 = vld [vmem:[%s1 + $0x2c] sm:$0xf]
    %v72 = vld [vmem:[%s1 + $0x30] sm:$0xf]
    %v73 = vld [vmem:[%s1 + $0x34] sm:$0xf]
    %v74 = vld [vmem:[%s1 + $0x38] sm:$0xf]
    %v75 = vld [vmem:[%s1 + $0x3c] sm:$0xf]
    %v92 = vunpack.c.l.b16 %v60
    %v93 = vunpack.c.l.b16 %v61
    %v94 = vunpack.c.l.b16 %v62
    %v95 = vunpack.c.l.b16 %v63
    %v96 = vunpack.c.l.b16 %v64
    %v97 = vunpack.c.l.b16 %v65
    %v98 = vunpack.c.l.b16 %v66
    %v99 = vunpack.c.l.b16 %v67
    %v100 = vunpack.c.l.b16 %v68
    %v101 = vunpack.c.l.b16 %v69
    %v102 = vunpack.c.l.b16 %v70
    %v103 = vunpack.c.l.b16 %v71
    %v104 = vunpack.c.l.b16 %v72
    %v105 = vunpack.c.l.b16 %v73
    %v106 = vunpack.c.l.b16 %v74
    %v107 = vunpack.c.l.b16 %v75
    %v108 = vpack.c.b16 %v93, %v92
    %v109 = vpack.c.b16 %v95, %v94
    %v110 = vpack.c.b16 %v97, %v96
    %v111 = vpack.c.b16 %v99, %v98
    %v112 = vpack.c.b16 %v101, %v100
    %v113 = vpack.c.b16 %v103, %v102
    %v114 = vpack.c.b16 %v105, %v104
    %v115 = vpack.c.b16 %v107, %v106
    %124 = vmatprep.subr.bf16.mxu0 0
    %125 = vmatpush1.bf16.msra.mxu0 %v115
    %126 = vmatprep.subr.bf16.mxu0 0
    %127 = vmatpush1.bf16.msra.mxu0 %v114
    %128 = vmatprep.subr.bf16.mxu0 0
    %129 = vmatpush1.bf16.msra.mxu0 %v113
    %130 = vmatprep.subr.bf16.mxu0 0
    %131 = vmatpush1.bf16.msra.mxu0 %v112
    %132 = vmatprep.subr.bf16.mxu0 0
    %133 = vmatpush1.bf16.msra.mxu0 %v111
    %134 = vmatprep.subr.bf16.mxu0 0
    %135 = vmatpush1.bf16.msra.mxu0 %v110
    %136 = vmatprep.subr.bf16.mxu0 0
    %137 = vmatpush1.bf16.msra.mxu0 %v109
    %138 = vmatprep.subr.bf16.mxu0 0
    %139 = vmatpush1.bf16.msra.mxu0 %v108
    %140 = vmatprep.subr.bf16.mxu0 0
    %141 = vmatpush2.bf16.msra.mxu0 0
    %142 = vmatprep.subr.bf16.mxu0 0
    %143 = vmatpush2.bf16.msra.mxu0 0
    %144 = vmatprep.subr.bf16.mxu0 0
    %145 = vmatpush2.bf16.msra.mxu0 0
    %146 = vmatprep.subr.bf16.mxu0 0
    %147 = vmatpush2.bf16.msra.mxu0 0
    %148 = vmatprep.subr.bf16.mxu0 0
    %149 = vmatpush2.bf16.msra.mxu0 0
    %150 = vmatprep.subr.bf16.mxu0 0
    %151 = vmatpush2.bf16.msra.mxu0 0
    %152 = vmatprep.subr.bf16.mxu0 0
    %153 = vmatpush2.bf16.msra.mxu0 0
    %154 = vmatprep.subr.bf16.mxu0 0
    %155 = vmatpush2.bf16.msra.mxu0 0
    %156 = vmatprep.mubr.bf16.mxu0 0
    %157 = vmatmul.mubr.bf16.gmra.mxu0 %v59
    %v158 = vpop.f32.mrf.mxu0
    %v159 = vadd.f32 0.0, %v158
    %v160 = vpop.f32.mrf.mxu0
    %v161 = vpop.f32.mrf.mxu0
    %v162 = vpop.f32.mrf.mxu0
    %163 = vdwg.mxu0
    %v164 = vmin.f32 %v159, 1.0
    %v165 = vld [vmem:[#allocation3] sm:$0xff]
    %vm166 = vcmask 64512
    %v167 = vsel %vm166, %v164, 0.0
    %168 = vadd.xlane.f32.xlu0 %v167
    %v169 = vpop.xlane.xlu0 %168
    %v170 = vadd.f32 %v165, %v169
    %vm171 = vcmask 7168
    %172 = vst.msk [vmem:[#allocation3] sm:$0xff] %vm171, %v170
    %v173 = vld [vmem:[#allocation2] sm:$0xff]
    %v174 = vld [vmem:[%s2] sm:$0xff]
    %v176 = vsel %vm166, %v164, 0
    %178 = vmatprep.subr.mxu0 0.0
    %179 = vmatpush1.msra.mxu0 0.0
    %180 = vmatprep.subr.mxu0 0.0
    %181 = vmatpush1.msra.mxu0 0.0
    %182 = vmatprep.subr.mxu0 0.0
    %183 = vmatpush1.msra.mxu0 0.0
    %184 = vmatprep.subr.mxu0 0.0
    %185 = vmatpush1.msra.mxu0 0.0
    %186 = vmatprep.subr.mxu0 0.0
    %187 = vmatpush1.msra.mxu0 0.0
    %188 = vmatprep.subr.mxu0 0.0
    %189 = vmatpush1.msra.mxu0 0.0
    %190 = vmatprep.subr.mxu0 0.0
    %191 = vmatpush1.msra.mxu0 0.0
    %192 = vmatprep.subr.mxu0 0.0
    %193 = vmatpush1.msra.mxu0 0.0
    %194 = vmatprep.subr.mxu0 0.0
    %195 = vmatpush1.msra.mxu0 0.0
    %196 = vmatprep.subr.mxu0 0.0
    %197 = vmatpush1.msra.mxu0 0.0
    %198 = vmatprep.subr.mxu0 0.0
    %199 = vmatpush1.msra.mxu0 0.0
    %200 = vmatprep.subr.mxu0 0.0
    %201 = vmatpush1.msra.mxu0 0.0
    %202 = vmatprep.subr.mxu0 0.0
    %203 = vmatpush1.msra.mxu0 0.0
    %204 = vmatprep.subr.mxu0 0.0
    %205 = vmatpush1.msra.mxu0 0.0
    %206 = vmatprep.subr.mxu0 0.0
    %207 = vmatpush1.msra.mxu0 0.0
    %208 = vmatprep.subr.mxu0 0.0
    %209 = vmatpush1.msra.mxu0 %v174
    %210 = vmatprep.subr.mxu0 0.0
    %211 = vmatpush2.msra.mxu0 0.0
    %212 = vmatprep.subr.mxu0 0.0
    %213 = vmatpush2.msra.mxu0 0.0
    %214 = vmatprep.subr.mxu0 0.0
    %215 = vmatpush2.msra.mxu0 0.0
    %216 = vmatprep.subr.mxu0 0.0
    %217 = vmatpush2.msra.mxu0 0.0
    %218 = vmatprep.subr.mxu0 0.0
    %219 = vmatpush2.msra.mxu0 0.0
    %220 = vmatprep.subr.mxu0 0.0
    %221 = vmatpush2.msra.mxu0 0.0
    %222 = vmatprep.subr.mxu0 0.0
    %223 = vmatpush2.msra.mxu0 0.0
    %224 = vmatprep.subr.mxu0 0.0
    %225 = vmatpush2.msra.mxu0 0.0
    %226 = vmatprep.subr.mxu0 0.0
    %227 = vmatpush2.msra.mxu0 0.0
    %228 = vmatprep.subr.mxu0 0.0
    %229 = vmatpush2.msra.mxu0 0.0
    %230 = vmatprep.subr.mxu0 0.0
    %231 = vmatpush2.msra.mxu0 0.0
    %232 = vmatprep.subr.mxu0 0.0
    %233 = vmatpush2.msra.mxu0 0.0
    %234 = vmatprep.subr.mxu0 0.0
    %235 = vmatpush2.msra.mxu0 0.0
    %236 = vmatprep.subr.mxu0 0.0
    %237 = vmatpush2.msra.mxu0 0.0
    %238 = vmatprep.subr.mxu0 0.0
    %239 = vmatpush2.msra.mxu0 0.0
    %240 = vmatprep.subr.mxu0 0.0
    %241 = vmatpush2.msra.mxu0 0.0
    %242 = vmatprep.mubr.f32.mxu0 0.0
    %243 = vmatmul.mubr.f32.gmra.mxu0 %v176
    %v244 = vpop.f32.mrf.mxu0
    %v245 = vadd.f32 0.0, %v244
    %v246 = vpop.f32.mrf.mxu0
    %247 = vdwg.mxu0
    %v248 = vadd.f32 %v173, %v245
    %249 = vst [vmem:[#allocation2] sm:$0xff] %v248
    // Predicated region
    $region34: #{tpu_custom_call.1} parent=1 // pred_check
      %p250 = pneg %p40
    $region35: #{tpu_custom_call.1} parent=1 // pred_check_branch
      %252 = sbr.rel (%p250) target = $region37
    $region36: #{tpu_custom_call.1} parent=1 // pred_region
      %v253 = vld [vmem:[#allocation3] sm:$0xff]
      %v254 = vadd.f32 %v253, 1.0
      %v255 = vld [vmem:[#allocation2] sm:$0xff]
      %v256 = vld [vmem:[%s3] sm:$0xff]
      %v257 = vadd.f32 %v255, %v256
      %v258 = vrcp.pop %v254
      %260 = vset.pattern.permute.xlu0 0
      %261 = vperm.xlu0 %260, %v258
      %v262 = vpop.permute.xlu0 %261
      %v264 = vmul.f32 %v257, %v262
      %v265 = vld [vmem:[#allocation4] sm:$0xff]
      %v266 = vld [vmem:[#allocation4 + $0x8] sm:$0xff]
      %v267 = vld [vmem:[#allocation4 + $0x10] sm:$0xff]
      %v268 = vld [vmem:[#allocation4 + $0x18] sm:$0xff]
      %v269 = vld [vmem:[#allocation4 + $0x20] sm:$0xff]
      %v270 = vld [vmem:[#allocation4 + $0x28] sm:$0xff]
      %v271 = vld [vmem:[#allocation4 + $0x30] sm:$0xff]
      %v272 = vld [vmem:[#allocation4 + $0x38] sm:$0xff]
      %v273 = vld [vmem:[#allocation4 + $0x40] sm:$0xff]
      %v274 = vld [vmem:[#allocation4 + $0x48] sm:$0xff]
      %v275 = vld [vmem:[#allocation4 + $0x50] sm:$0xff]
      %v276 = vld [vmem:[#allocation4 + $0x58] sm:$0xff]
      %v277 = vld [vmem:[#allocation4 + $0x60] sm:$0xff]
      %v278 = vld [vmem:[#allocation4 + $0x68] sm:$0xff]
      %v279 = vld [vmem:[#allocation4 + $0x70] sm:$0xff]
      %v280 = vld [vmem:[#allocation4 + $0x78] sm:$0xff]
      %v281 = vld [vmem:[%s5] sm:$0x1]
      %v283 = vlaneseq
      %v284 = vshrl.u32 %v283, 7
      %v285 = vsub.s32 0, %v284
      %v286 = vrot.slane %v281, %v285
      %288 = vmatprep.subr.mxu0 0.0
      %289 = vmatpush1.msra.mxu0 %v280
      %290 = vmatprep.subr.mxu0 0.0
      %291 = vmatpush1.msra.mxu0 %v279
      %292 = vmatprep.subr.mxu0 0.0
      %293 = vmatpush1.msra.mxu0 %v278
      %294 = vmatprep.subr.mxu0 0.0
      %295 = vmatpush1.msra.mxu0 %v277
      %296 = vmatprep.subr.mxu0 0.0
      %297 = vmatpush1.msra.mxu0 %v276
      %298 = vmatprep.subr.mxu0 0.0
      %299 = vmatpush1.msra.mxu0 %v275
      %300 = vmatprep.subr.mxu0 0.0
      %301 = vmatpush1.msra.mxu0 %v274
      %302 = vmatprep.subr.mxu0 0.0
      %303 = vmatpush1.msra.mxu0 %v273
      %304 = vmatprep.subr.mxu0 0.0
      %305 = vmatpush1.msra.mxu0 %v272
      %306 = vmatprep.subr.mxu0 0.0
      %307 = vmatpush1.msra.mxu0 %v271
      %308 = vmatprep.subr.mxu0 0.0
      %309 = vmatpush1.msra.mxu0 %v270
      %310 = vmatprep.subr.mxu0 0.0
      %311 = vmatpush1.msra.mxu0 %v269
      %312 = vmatprep.subr.mxu0 0.0
      %313 = vmatpush1.msra.mxu0 %v268
      %314 = vmatprep.subr.mxu0 0.0
      %315 = vmatpush1.msra.mxu0 %v267
      %316 = vmatprep.subr.mxu0 0.0
      %317 = vmatpush1.msra.mxu0 %v266
      %318 = vmatprep.subr.mxu0 0.0
      %319 = vmatpush1.msra.mxu0 %v265
      %320 = vmatprep.subr.mxu0 0.0
      %321 = vmatpush2.msra.mxu0 0.0
      %322 = vmatprep.subr.mxu0 0.0
      %323 = vmatpush2.msra.mxu0 0.0
      %324 = vmatprep.subr.mxu0 0.0
      %325 = vmatpush2.msra.mxu0 0.0
      %326 = vmatprep.subr.mxu0 0.0
      %327 = vmatpush2.msra.mxu0 0.0
      %328 = vmatprep.subr.mxu0 0.0
      %329 = vmatpush2.msra.mxu0 0.0
      %330 = vmatprep.subr.mxu0 0.0
      %331 = vmatpush2.msra.mxu0 0.0
      %332 = vmatprep.subr.mxu0 0.0
      %333 = vmatpush2.msra.mxu0 0.0
      %334 = vmatprep.subr.mxu0 0.0
      %335 = vmatpush2.msra.mxu0 0.0
      %336 = vmatprep.subr.mxu0 0.0
      %337 = vmatpush2.msra.mxu0 0.0
      %338 = vmatprep.subr.mxu0 0.0
      %339 = vmatpush2.msra.mxu0 0.0
      %340 = vmatprep.subr.mxu0 0.0
      %341 = vmatpush2.msra.mxu0 0.0
      %342 = vmatprep.subr.mxu0 0.0
      %343 = vmatpush2.msra.mxu0 0.0
      %344 = vmatprep.subr.mxu0 0.0
      %345 = vmatpush2.msra.mxu0 0.0
      %346 = vmatprep.subr.mxu0 0.0
      %347 = vmatpush2.msra.mxu0 0.0
      %348 = vmatprep.subr.mxu0 0.0
      %349 = vmatpush2.msra.mxu0 0.0
      %350 = vmatprep.subr.mxu0 0.0
      %351 = vmatpush2.msra.mxu0 0.0
      %352 = vmatprep.mubr.f32.mxu0 0.0
      %353 = vmatmul.mubr.f32.gmra.mxu0 %v264
      %v354 = vpop.f32.mrf.mxu0
      %v355 = vadd.f32 %v286, %v354
      %v356 = vpop.f32.mrf.mxu0
      %357 = vdwg.mxu0
      %358 = vst [vmem:[#allocation7] sm:$0xff] %v355
    $region37: #{tpu_custom_call.1} parent=1 // pred_fallthru
      _
    // Predicated region
    $region38: #{tpu_custom_call.1} parent=1 // pred_check
      _
    $region39: #{tpu_custom_call.1} parent=1 // pred_check_branch
      %360 = sbr.rel (0) target = $region41
    $region40: #{tpu_custom_call.1} parent=1 // pred_region
      %s362 = ssub.s32 128, 128
      %363 = vsyncadd [#allocation6], %s362
      %s365 = sshll.u32 [#allocation7], 4
      %s366 = int_to_ptr.vmem [resolvable:$true] %s365
      %368 = dma.vmem_to_hbm [thread:$0]  %s366, 128, %s6, [#allocation6]
    $region41: #{tpu_custom_call.1} parent=1 // pred_fallthru
      _
    // Predicated region
    $region42: #{tpu_custom_call.1} parent=1 // pred_check
      _
    $region43: #{tpu_custom_call.1} parent=1 // pred_check_branch
      %370 = sbr.rel (0) target = $region45
    $region44: #{tpu_custom_call.1} parent=1 // pred_region
      %371 = dma.done [#allocation6], 128
    $region45: #{tpu_custom_call.1} parent=1 // pred_fallthru
      _
    %372 = vsyncpa [#allocation5], 1
    %373 = vsyncpa [#allocation6], 1

// kernel: tpu_custom_call.1
$region0: #{tpu_custom_call.1}
  #allocation0 [shape = 'u32[]', space=smem, size = 0x4, offset = 0x4, fixed_abs, tag = 'smem constant byte address 0x4 - core index']
  #allocation1 [shape = 'u32[144,128]{1,0:T(1,128)}', space=vmem, size = 0x12000, scoped, tag = 'internal scratch']
  #allocation2 [shape = 'f32[8,128]{1,0:T(8,128)}', space=vmem, size = 0x1000, scoped, tag = 'scratch operand']
  #allocation3 [shape = 'f32[8,1]{1,0:T(8,128)}', space=vmem, size = 0x1000, scoped, tag = 'scratch operand']
  %s0 = inlined_call_operand.vmem [shape: s32[1,128], index: 0, kind: input, shape index: {}]
  %s1 = inlined_call_operand.vmem [shape: bf16[128,8], index: 1, kind: input, shape index: {}]
  %s2 = inlined_call_operand.vmem [shape: f32[8,128], index: 2, kind: input, shape index: {}]
  %s3 = inlined_call_operand.vmem [shape: f32[8,128], index: 3, kind: input, shape index: {}]
  %s4 = inlined_call_operand.hbm [shape: f32[128,128], index: 4, kind: input, shape index: {}]
  %s5 = inlined_call_operand.vmem [shape: f32[1,128], index: 5, kind: input, shape index: {}]
  %s6 = inlined_call_operand.hbm [shape: f32[8,128], index: 6, kind: output, shape index: {}]
  %s7 = sld [smem:[#allocation0]]
  $region46: #{tpu_custom_call.1} parent=0
    _
  %s9 = ssub.s32 1, %s7
  %s10 = scalar_select 0, %s9, %s7
  $region1: #{tpu_custom_call.1} parent=0
    #allocation4 [shape = 'u8[65536]{0}', space=vmem, size = 0x10000, scoped, tag = 'input window, operand 4, single buffered']
    #allocation5 [shape = 's32[1]{0}', space=sflag, size = 0x4, scoped, tag = 'scoped memory for tpu_custom_call.1']
    #allocation6 [shape = 's32[1]{0}', space=sflag, size = 0x4, scoped, tag = 'scoped memory for tpu_custom_call.1']
    #allocation7 [shape = 'u8[4096]{0}', space=vmem, size = 0x1000, scoped, tag = 'output window, operand 0, single buffered']
    %11 = vsyncpa [#allocation5], 0
    %12 = vsyncpa [#allocation6], 0
    // Predicated region
    $region2: #{tpu_custom_call.1} parent=1 // pred_check
      _
    $region3: #{tpu_custom_call.1} parent=1 // pred_check_branch
      %14 = sbr.rel (0) target = $region5
    $region4: #{tpu_custom_call.1} parent=1 // pred_region
      _
    $region5: #{tpu_custom_call.1} parent=1 // pred_fallthru
      _
    // Predicated region
    $region6: #{tpu_custom_call.1} parent=1 // pred_check
      _
    $region7: #{tpu_custom_call.1} parent=1 // pred_check_branch
      %16 = sbr.rel (0) target = $region9
    $region8: #{tpu_custom_call.1} parent=1 // pred_region
      _
    $region9: #{tpu_custom_call.1} parent=1 // pred_fallthru
      _
    // Predicated region
    $region10: #{tpu_custom_call.1} parent=1 // pred_check
      _
    $region11: #{tpu_custom_call.1} parent=1 // pred_check_branch
      %18 = sbr.rel (0) target = $region13
    $region12: #{tpu_custom_call.1} parent=1 // pred_region
      _
    $region13: #{tpu_custom_call.1} parent=1 // pred_fallthru
      _
    // Predicated region
    $region14: #{tpu_custom_call.1} parent=1 // pred_check
      _
    $region15: #{tpu_custom_call.1} parent=1 // pred_check_branch
      %20 = sbr.rel (0) target = $region17
    $region16: #{tpu_custom_call.1} parent=1 // pred_region
      _
    $region17: #{tpu_custom_call.1} parent=1 // pred_fallthru
      _
    // Predicated region
    $region18: #{tpu_custom_call.1} parent=1 // pred_check
      _
    $region19: #{tpu_custom_call.1} parent=1 // pred_check_branch
      %22 = sbr.rel (0) target = $region21
    $region20: #{tpu_custom_call.1} parent=1 // pred_region
      %s24 = ssub.s32 2048, 2048
      %25 = vsyncadd [#allocation5], %s24
      %s26 = sshll.u32 [#allocation4], 4
      %s27 = int_to_ptr.vmem [resolvable:$true] %s26
      %32 = dma.hbm_to_vmem [thread:$0]  %s4, 2048, %s27, [#allocation5], 128, 128, 8
    $region21: #{tpu_custom_call.1} parent=1 // pred_fallthru
      _
    // Predicated region
    $region22: #{tpu_custom_call.1} parent=1 // pred_check
      _
    $region23: #{tpu_custom_call.1} parent=1 // pred_check_branch
      %34 = sbr.rel (0) target = $region25
    $region24: #{tpu_custom_call.1} parent=1 // pred_region
      _
    $region25: #{tpu_custom_call.1} parent=1 // pred_fallthru
      _
    // Predicated region
    $region26: #{tpu_custom_call.1} parent=1 // pred_check
      _
    $region27: #{tpu_custom_call.1} parent=1 // pred_check_branch
      %36 = sbr.rel (0) target = $region29
    $region28: #{tpu_custom_call.1} parent=1 // pred_region
      %37 = dma.done [#allocation5], 2048
    $region29: #{tpu_custom_call.1} parent=1 // pred_fallthru
      _
    %s39 = smul.u32 0, 8
    %p40 = scmp.eq.s32.totalorder 0, 0
    // Predicated region
    $region30: #{tpu_custom_call.1} parent=1 // pred_check
      %p41 = pneg %p40
    $region31: #{tpu_custom_call.1} parent=1 // pred_check_branch
      %43 = sbr.rel (%p41) target = $region33
    $region32: #{tpu_custom_call.1} parent=1 // pred_region
      %44 = vst [vmem:[#allocation2] sm:$0xff] 0.0
      %vm45 = vcmask 7168
      %46 = vst.msk [vmem:[#allocation3] sm:$0xff] %vm45, 0.0
    $region33: #{tpu_custom_call.1} parent=1 // pred_fallthru
      _
    %v47 = vlaneseq
    %v48 = vshrl.u32 %v47, 7
    %v49 = vstv %s39
    %v50 = vadd.s32 %v48, %v49
    %v51 = vld [vmem:[%s0] sm:$0x1]
    %v52 = vlaneseq
    %v53 = vshrl.u32 %v52, 7
    %v54 = vsub.s32 0, %v53
    %v55 = vrot.slane %v51, %v54
    %vm56 = vcmp.eq.s32.totalorder %v55, %v50
    %v57 = vsel %vm56, 1, 0
    %v58 = vcvt.s32.f32 %v57
    %v59 = vpack.c.bf16 %v58, %v58
    %v60 = vld [vmem:[%s1] sm:$0xf]
    %v61 = vld [vmem:[%s1 + $0x4] sm:$0xf]
    %v62 = vld [vmem:[%s1 + $0x8] sm:$0xf]
    %v63 = vld [vmem:[%s1 + $0xc] sm:$0xf]
    %v64 = vld [vmem:[%s1 + $0x10] sm:$0xf]
    %v65 = vld [vmem:[%s1 + $0x14] sm:$0xf]
    %v66 = vld [vmem:[%s1 + $0x18] sm:$0xf]
    %v67 = vld [vmem:[%s1 + $0x1c] sm:$0xf]
    %v68 = vld [vmem:[%s1 + $0x20] sm:$0xf]
    %v69 = vld [vmem:[%s1 + $0x24] sm:$0xf]
    %v70 = vld [vmem:[%s1 + $0x28] sm:$0xf]
    %v71 = vld [vmem:[%s1 + $0x2c] sm:$0xf]
    %v72 = vld [vmem:[%s1 + $0x30] sm:$0xf]
    %v73 = vld [vmem:[%s1 + $0x34] sm:$0xf]
    %v74 = vld [vmem:[%s1 + $0x38] sm:$0xf]
    %v75 = vld [vmem:[%s1 + $0x3c] sm:$0xf]
    %v92 = vunpack.c.l.b16 %v60
    %v93 = vunpack.c.l.b16 %v61
    %v94 = vunpack.c.l.b16 %v62
    %v95 = vunpack.c.l.b16 %v63
    %v96 = vunpack.c.l.b16 %v64
    %v97 = vunpack.c.l.b16 %v65
    %v98 = vunpack.c.l.b16 %v66
    %v99 = vunpack.c.l.b16 %v67
    %v100 = vunpack.c.l.b16 %v68
    %v101 = vunpack.c.l.b16 %v69
    %v102 = vunpack.c.l.b16 %v70
    %v103 = vunpack.c.l.b16 %v71
    %v104 = vunpack.c.l.b16 %v72
    %v105 = vunpack.c.l.b16 %v73
    %v106 = vunpack.c.l.b16 %v74
    %v107 = vunpack.c.l.b16 %v75
    %v108 = vpack.c.b16 %v93, %v92
    %v109 = vpack.c.b16 %v95, %v94
    %v110 = vpack.c.b16 %v97, %v96
    %v111 = vpack.c.b16 %v99, %v98
    %v112 = vpack.c.b16 %v101, %v100
    %v113 = vpack.c.b16 %v103, %v102
    %v114 = vpack.c.b16 %v105, %v104
    %v115 = vpack.c.b16 %v107, %v106
    %124 = vmatprep.subr.bf16.mxu0 0
    %125 = vmatpush1.bf16.msra.mxu0 %v115
    %126 = vmatprep.subr.bf16.mxu0 0
    %127 = vmatpush1.bf16.msra.mxu0 %v114
    %128 = vmatprep.subr.bf16.mxu0 0
    %129 = vmatpush1.bf16.msra.mxu0 %v113
    %130 = vmatprep.subr.bf16.mxu0 0
    %131 = vmatpush1.bf16.msra.mxu0 %v112
    %132 = vmatprep.subr.bf16.mxu0 0
    %133 = vmatpush1.bf16.msra.mxu0 %v111
    %134 = vmatprep.subr.bf16.mxu0 0
    %135 = vmatpush1.bf16.msra.mxu0 %v110
    %136 = vmatprep.subr.bf16.mxu0 0
    %137 = vmatpush1.bf16.msra.mxu0 %v109
    %138 = vmatprep.subr.bf16.mxu0 0
    %139 = vmatpush1.bf16.msra.mxu0 %v108
    %140 = vmatprep.subr.bf16.mxu0 0
    %141 = vmatpush2.bf16.msra.mxu0 0
    %142 = vmatprep.subr.bf16.mxu0 0
    %143 = vmatpush2.bf16.msra.mxu0 0
    %144 = vmatprep.subr.bf16.mxu0 0
    %145 = vmatpush2.bf16.msra.mxu0 0
    %146 = vmatprep.subr.bf16.mxu0 0
    %147 = vmatpush2.bf16.msra.mxu0 0
    %148 = vmatprep.subr.bf16.mxu0 0
    %149 = vmatpush2.bf16.msra.mxu0 0
    %150 = vmatprep.subr.bf16.mxu0 0
    %151 = vmatpush2.bf16.msra.mxu0 0
    %152 = vmatprep.subr.bf16.mxu0 0
    %153 = vmatpush2.bf16.msra.mxu0 0
    %154 = vmatprep.subr.bf16.mxu0 0
    %155 = vmatpush2.bf16.msra.mxu0 0
    %156 = vmatprep.mubr.bf16.mxu0 0
    %157 = vmatmul.mubr.bf16.gmra.mxu0 %v59
    %v158 = vpop.f32.mrf.mxu0
    %v159 = vadd.f32 0.0, %v158
    %v160 = vpop.f32.mrf.mxu0
    %v161 = vpop.f32.mrf.mxu0
    %v162 = vpop.f32.mrf.mxu0
    %163 = vdwg.mxu0
    %v164 = vmin.f32 %v159, 1.0
    %v165 = vld [vmem:[#allocation3] sm:$0xff]
    %vm166 = vcmask 64512
    %v167 = vsel %vm166, %v164, 0.0
    %168 = vadd.xlane.f32.xlu0 %v167
    %v169 = vpop.xlane.xlu0 %168
    %v170 = vadd.f32 %v165, %v169
    %vm171 = vcmask 7168
    %172 = vst.msk [vmem:[#allocation3] sm:$0xff] %vm171, %v170
    %v173 = vld [vmem:[#allocation2] sm:$0xff]
    %v174 = vld [vmem:[%s2] sm:$0xff]
    %v176 = vsel %vm166, %v164, 0
    %178 = vmatprep.subr.mxu0 0.0
    %179 = vmatpush1.msra.mxu0 0.0
    %180 = vmatprep.subr.mxu0 0.0
    %181 = vmatpush1.msra.mxu0 0.0
    %182 = vmatprep.subr.mxu0 0.0
    %183 = vmatpush1.msra.mxu0 0.0
    %184 = vmatprep.subr.mxu0 0.0
    %185 = vmatpush1.msra.mxu0 0.0
    %186 = vmatprep.subr.mxu0 0.0
    %187 = vmatpush1.msra.mxu0 0.0
    %188 = vmatprep.subr.mxu0 0.0
    %189 = vmatpush1.msra.mxu0 0.0
    %190 = vmatprep.subr.mxu0 0.0
    %191 = vmatpush1.msra.mxu0 0.0
    %192 = vmatprep.subr.mxu0 0.0
    %193 = vmatpush1.msra.mxu0 0.0
    %194 = vmatprep.subr.mxu0 0.0
    %195 = vmatpush1.msra.mxu0 0.0
    %196 = vmatprep.subr.mxu0 0.0
    %197 = vmatpush1.msra.mxu0 0.0
    %198 = vmatprep.subr.mxu0 0.0
    %199 = vmatpush1.msra.mxu0 0.0
    %200 = vmatprep.subr.mxu0 0.0
    %201 = vmatpush1.msra.mxu0 0.0
    %202 = vmatprep.subr.mxu0 0.0
    %203 = vmatpush1.msra.mxu0 0.0
    %204 = vmatprep.subr.mxu0 0.0
    %205 = vmatpush1.msra.mxu0 0.0
    %206 = vmatprep.subr.mxu0 0.0
    %207 = vmatpush1.msra.mxu0 0.0
    %208 = vmatprep.subr.mxu0 0.0
    %209 = vmatpush1.msra.mxu0 %v174
    %210 = vmatprep.subr.mxu0 0.0
    %211 = vmatpush2.msra.mxu0 0.0
    %212 = vmatprep.subr.mxu0 0.0
    %213 = vmatpush2.msra.mxu0 0.0
    %214 = vmatprep.subr.mxu0 0.0
    %215 = vmatpush2.msra.mxu0 0.0
    %216 = vmatprep.subr.mxu0 0.0
    %217 = vmatpush2.msra.mxu0 0.0
    %218 = vmatprep.subr.mxu0 0.0
    %219 = vmatpush2.msra.mxu0 0.0
    %220 = vmatprep.subr.mxu0 0.0
    %221 = vmatpush2.msra.mxu0 0.0
    %222 = vmatprep.subr.mxu0 0.0
    %223 = vmatpush2.msra.mxu0 0.0
    %224 = vmatprep.subr.mxu0 0.0
    %225 = vmatpush2.msra.mxu0 0.0
    %226 = vmatprep.subr.mxu0 0.0
    %227 = vmatpush2.msra.mxu0 0.0
    %228 = vmatprep.subr.mxu0 0.0
    %229 = vmatpush2.msra.mxu0 0.0
    %230 = vmatprep.subr.mxu0 0.0
    %231 = vmatpush2.msra.mxu0 0.0
    %232 = vmatprep.subr.mxu0 0.0
    %233 = vmatpush2.msra.mxu0 0.0
    %234 = vmatprep.subr.mxu0 0.0
    %235 = vmatpush2.msra.mxu0 0.0
    %236 = vmatprep.subr.mxu0 0.0
    %237 = vmatpush2.msra.mxu0 0.0
    %238 = vmatprep.subr.mxu0 0.0
    %239 = vmatpush2.msra.mxu0 0.0
    %240 = vmatprep.subr.mxu0 0.0
    %241 = vmatpush2.msra.mxu0 0.0
    %242 = vmatprep.mubr.f32.mxu0 0.0
    %243 = vmatmul.mubr.f32.gmra.mxu0 %v176
    %v244 = vpop.f32.mrf.mxu0
    %v245 = vadd.f32 0.0, %v244
    %v246 = vpop.f32.mrf.mxu0
    %247 = vdwg.mxu0
    %v248 = vadd.f32 %v173, %v245
    %249 = vst [vmem:[#allocation2] sm:$0xff] %v248
    // Predicated region
    $region34: #{tpu_custom_call.1} parent=1 // pred_check
      %p250 = pneg %p40
    $region35: #{tpu_custom_call.1} parent=1 // pred_check_branch
      %252 = sbr.rel (%p250) target = $region37
    $region36: #{tpu_custom_call.1} parent=1 // pred_region
      %v253 = vld [vmem:[#allocation3] sm:$0xff]
      %v254 = vadd.f32 %v253, 1.0
      %v255 = vld [vmem:[#allocation2] sm:$0xff]
      %v256 = vld [vmem:[%s3] sm:$0xff]
      %v257 = vadd.f32 %v255, %v256
      %v258 = vrcp.pop %v254
      %260 = vset.pattern.permute.xlu0 0
      %261 = vperm.xlu0 %260, %v258
      %v262 = vpop.permute.xlu0 %261
      %v264 = vmul.f32 %v257, %v262
      %v265 = vld [vmem:[#allocation4] sm:$0xff]
      %v266 = vld [vmem:[#allocation4 + $0x8] sm:$0xff]
      %v267 = vld [vmem:[#allocation4 + $0x10] sm:$0xff]
      %v268 = vld [vmem:[#allocation4 + $0x18] sm:$0xff]
      %v269 = vld [vmem:[#allocation4 + $0x20] sm:$0xff]
      %v270 = vld [vmem:[#allocation4 + $0x28] sm:$0xff]
      %v271 = vld [vmem:[#allocation4 + $0x30] sm:$0xff]
      %v272 = vld [vmem:[#allocation4 + $0x38] sm:$0xff]
      %v273 = vld [vmem:[#allocation4 + $0x40] sm:$0xff]
      %v274 = vld [vmem:[#allocation4 + $0x48] sm:$0xff]
      %v275 = vld [vmem:[#allocation4 + $0x50] sm:$0xff]
      %v276 = vld [vmem:[#allocation4 + $0x58] sm:$0xff]
      %v277 = vld [vmem:[#allocation4 + $0x60] sm:$0xff]
      %v278 = vld [vmem:[#allocation4 + $0x68] sm:$0xff]
      %v279 = vld [vmem:[#allocation4 + $0x70] sm:$0xff]
      %v280 = vld [vmem:[#allocation4 + $0x78] sm:$0xff]
      %v281 = vld [vmem:[%s5] sm:$0x1]
      %v283 = vlaneseq
      %v284 = vshrl.u32 %v283, 7
      %v285 = vsub.s32 0, %v284
      %v286 = vrot.slane %v281, %v285
      %288 = vmatprep.subr.mxu0 0.0
      %289 = vmatpush1.msra.mxu0 %v280
      %290 = vmatprep.subr.mxu0 0.0
      %291 = vmatpush1.msra.mxu0 %v279
      %292 = vmatprep.subr.mxu0 0.0
      %293 = vmatpush1.msra.mxu0 %v278
      %294 = vmatprep.subr.mxu0 0.0
      %295 = vmatpush1.msra.mxu0 %v277
      %296 = vmatprep.subr.mxu0 0.0
      %297 = vmatpush1.msra.mxu0 %v276
      %298 = vmatprep.subr.mxu0 0.0
      %299 = vmatpush1.msra.mxu0 %v275
      %300 = vmatprep.subr.mxu0 0.0
      %301 = vmatpush1.msra.mxu0 %v274
      %302 = vmatprep.subr.mxu0 0.0
      %303 = vmatpush1.msra.mxu0 %v273
      %304 = vmatprep.subr.mxu0 0.0
      %305 = vmatpush1.msra.mxu0 %v272
      %306 = vmatprep.subr.mxu0 0.0
      %307 = vmatpush1.msra.mxu0 %v271
      %308 = vmatprep.subr.mxu0 0.0
      %309 = vmatpush1.msra.mxu0 %v270
      %310 = vmatprep.subr.mxu0 0.0
      %311 = vmatpush1.msra.mxu0 %v269
      %312 = vmatprep.subr.mxu0 0.0
      %313 = vmatpush1.msra.mxu0 %v268
      %314 = vmatprep.subr.mxu0 0.0
      %315 = vmatpush1.msra.mxu0 %v267
      %316 = vmatprep.subr.mxu0 0.0
      %317 = vmatpush1.msra.mxu0 %v266
      %318 = vmatprep.subr.mxu0 0.0
      %319 = vmatpush1.msra.mxu0 %v265
      %320 = vmatprep.subr.mxu0 0.0
      %321 = vmatpush2.msra.mxu0 0.0
      %322 = vmatprep.subr.mxu0 0.0
      %323 = vmatpush2.msra.mxu0 0.0
      %324 = vmatprep.subr.mxu0 0.0
      %325 = vmatpush2.msra.mxu0 0.0
      %326 = vmatprep.subr.mxu0 0.0
      %327 = vmatpush2.msra.mxu0 0.0
      %328 = vmatprep.subr.mxu0 0.0
      %329 = vmatpush2.msra.mxu0 0.0
      %330 = vmatprep.subr.mxu0 0.0
      %331 = vmatpush2.msra.mxu0 0.0
      %332 = vmatprep.subr.mxu0 0.0
      %333 = vmatpush2.msra.mxu0 0.0
      %334 = vmatprep.subr.mxu0 0.0
      %335 = vmatpush2.msra.mxu0 0.0
      %336 = vmatprep.subr.mxu0 0.0
      %337 = vmatpush2.msra.mxu0 0.0
      %338 = vmatprep.subr.mxu0 0.0
      %339 = vmatpush2.msra.mxu0 0.0
      %340 = vmatprep.subr.mxu0 0.0
      %341 = vmatpush2.msra.mxu0 0.0
      %342 = vmatprep.subr.mxu0 0.0
      %343 = vmatpush2.msra.mxu0 0.0
      %344 = vmatprep.subr.mxu0 0.0
      %345 = vmatpush2.msra.mxu0 0.0
      %346 = vmatprep.subr.mxu0 0.0
      %347 = vmatpush2.msra.mxu0 0.0
      %348 = vmatprep.subr.mxu0 0.0
      %349 = vmatpush2.msra.mxu0 0.0
      %350 = vmatprep.subr.mxu0 0.0
      %351 = vmatpush2.msra.mxu0 0.0
      %352 = vmatprep.mubr.f32.mxu0 0.0
      %353 = vmatmul.mubr.f32.gmra.mxu0 %v264
      %v354 = vpop.f32.mrf.mxu0
      %v355 = vadd.f32 %v286, %v354
      %v356 = vpop.f32.mrf.mxu0
      %357 = vdwg.mxu0
      %358 = vst [vmem:[#allocation7] sm:$0xff] %v355
    $region37: #{tpu_custom_call.1} parent=1 // pred_fallthru
      _
    // Predicated region
    $region38: #{tpu_custom_call.1} parent=1 // pred_check
      _
    $region39: #{tpu_custom_call.1} parent=1 // pred_check_branch
      %360 = sbr.rel (0) target = $region41
    $region40: #{tpu_custom_call.1} parent=1 // pred_region
      %s362 = ssub.s32 128, 128
      %363 = vsyncadd [#allocation6], %s362
      %s365 = sshll.u32 [#allocation7], 4
      %s366 = int_to_ptr.vmem [resolvable:$true] %s365
      %368 = dma.vmem_to_hbm [thread:$0]  %s366, 128, %s6, [#allocation6]
    $region41: #{tpu_custom_call.1} parent=1 // pred_fallthru
      _
    // Predicated region
    $region42: #{tpu_custom_call.1} parent=1 // pred_check
      _
    $region43: #{tpu_custom_call.1} parent=1 // pred_check_branch
      %370 = sbr.rel (0) target = $region45
    $region44: #{tpu_custom_call.1} parent=1 // pred_region
      %371 = dma.done [#allocation6], 128
    $region45: #{tpu_custom_call.1} parent=1 // pred_fallthru
      _
    %372 = vsyncpa [#allocation5], 1
    %373 = vsyncpa [#allocation6], 1

</llo_original>
